<compile_context>
chip_gen: v7x
topology: tpu7x:2x2x1
jax: 0.10.0
libtpu: 0.0.40
codegen_flags: <defaults>
</compile_context>

<pallas_src>
import jax
import jax.numpy as jnp
from jax.experimental import pallas as pl
from jax.experimental.pallas import tpu as pltpu

_LANE = 128


def _gde_gcn_kernel(x_ref, a_ref, w_ref, b_ref, o_ref):
    # x_ref: (BN, Fi)  bf16   (Fi = F padded to 128 lanes, zero-padded cols)
    # a_ref: (BN, BN)  bf16   (block-diagonal row-normalized A_hat)
    # w_ref: (Fi, Fp)  bf16   (zero-padded rows/cols)
    # b_ref: (1,  Fp)  f32    (zero-padded cols -> relu of pad lanes stays 0)
    # o_ref: (BN, Fp)  f32
    #
    # Step 1: graph aggregation for ALL batches in ONE matmul (block-diag A).
    y = jnp.dot(a_ref[...], x_ref[...], preferred_element_type=jnp.float32)
    # Only the narrow aggregation is requantized for the second MXU pass.
    y = y.astype(jnp.bfloat16)
    # Step 2: feature transform as ONE wide-lane matmul, f32 accumulation.
    h = jnp.dot(y, w_ref[...], preferred_element_type=jnp.float32)
    # Step 3: bias (added exactly once) + relu, full-lane f32 store.
    o_ref[...] = jnp.maximum(h + b_ref[...], 0.0).astype(o_ref.dtype)


def gde_gcn_forward(x, a_hat, w, b):
    """Fused pallas_call implementing gnn(x) = relu(A_hat @ x @ W + b).

    x: (B, N, F) f32, a_hat: (N, N) f32, w: (F, Fo) f32, b: (Fo,) f32
    returns (B, N, Fo) f32.
    """
    B, N, F = x.shape
    Fo = w.shape[1]
    Fi = pl.cdiv(F, _LANE) * _LANE      # lane-dense padded contraction width
    Fp = pl.cdiv(Fo, _LANE) * _LANE     # lane-dense padded output width
    BN = B * N
    out_dtype = x.dtype

    # bf16 operands (native MXU rate, half the DMA bytes); bias stays f32.
    x2d = jnp.pad(x.reshape(BN, F), ((0, 0), (0, Fi - F))).astype(jnp.bfloat16)
    # Block-diagonal A_hat: one (BN,BN)@(BN,Fi) matmul aggregates every batch.
    a_blk = jnp.kron(jnp.eye(B, dtype=a_hat.dtype), a_hat).astype(jnp.bfloat16)
    w_pad = jnp.pad(w, ((0, Fi - F), (0, Fp - Fo))).astype(jnp.bfloat16)
    # NOTE: bias padding MUST be zero so relu of the padded lanes stays zero.
    b_pad = jnp.pad(b.reshape(1, Fo), ((0, 0), (0, Fp - Fo))).astype(jnp.float32)

    out2d = pl.pallas_call(
        _gde_gcn_kernel,
        out_shape=jax.ShapeDtypeStruct((BN, Fp), out_dtype),
        # Whole-array blocks, no grid: single invocation, everything resident
        # exactly once in VMEM (no double-buffering of A_hat / W / b).
        in_specs=[pl.BlockSpec(memory_space=pltpu.MemorySpace.VMEM)] * 4,
        out_specs=pl.BlockSpec(memory_space=pltpu.MemorySpace.VMEM),
        compiler_params=pltpu.CompilerParams(
            # Explicit scoped-VMEM limit (v5e default is only 16 MiB) so the
            # single-block path keeps working for larger graphs before tiling.
            vmem_limit_bytes=32 * 1024 * 1024,
        ),
    )(x2d, a_blk, w_pad, b_pad)

    # Drop the lane padding and restore (B, N, Fo) — free layout ops in XLA.
    return out2d[:, :Fo].reshape(B, N, Fo)


class GDEFunc:
    """JAX/Pallas port of GDEFunc: forward(t, x) -> gnn(x), counts nfe."""

    def __init__(self, gnn):
        self.gnn = gnn
        # Host-side Python counter as in the PyTorch module.  NOTE: under
        # jit/scan/odeint tracing this counts traces, not evaluations (same
        # caveat as torch.compile on the original module).
        self.nfe = 0

    def forward(self, t, x):
        self.nfe += 1
        del t          # time is ignored by the wrapped gnn
        return self.gnn(x)

    __call__ = forward


if __name__ == "__main__":
    # Small shapes consistent with a node-feature GNN state:
    # batch=2, nodes=8, hidden=32.
    B, N, F = 2, 8, 32
    Fo = F

    key = jax.random.PRNGKey(0)
    kx, ka, kw, kb = jax.random.split(key, 4)

    x = jax.random.normal(kx, (B, N, F), dtype=jnp.float32)

    # Deterministic synthetic graph: random edges + self-loops, row-normalized.
    raw = (jax.random.uniform(ka, (N, N)) > 0.5).astype(jnp.float32)
    adj = jnp.maximum(raw, raw.T) + jnp.eye(N, dtype=jnp.float32)
    a_hat = adj / jnp.sum(adj, axis=1, keepdims=True)

    w = jax.random.normal(kw, (F, Fo), dtype=jnp.float32) * 0.1
    b = jax.random.normal(kb, (Fo,), dtype=jnp.float32) * 0.01

    gnn = jax.jit(lambda z: gde_gcn_forward(z, a_hat, w, b))
    gde = GDEFunc(gnn)

    t = jnp.float32(0.0)       # time argument, unused by the derivative fn
    out = gde(t, x)
    out = jax.block_until_ready(out)

    # Reference in plain JAX, mirroring the kernel's bf16 operand quantization
    # (aggregate-first order; products/accumulation in f32) so the comparison
    # is tight.
    xb = x.astype(jnp.bfloat16).astype(jnp.float32)
    ab = a_hat.astype(jnp.bfloat16).astype(jnp.float32)
    wb = w.astype(jnp.bfloat16).astype(jnp.float32)
    y_ref = jnp.einsum("nm,bmf->bnf", ab, xb)
    y_ref = y_ref.astype(jnp.bfloat16).astype(jnp.float32)
    ref = jnp.maximum(jnp.einsum("bnf,fo->bno", y_ref, wb) + b, 0.0)

    assert out.shape == (B, N, Fo)
    assert gde.nfe == 1
    assert jnp.allclose(out, ref, atol=1e-2, rtol=1e-2)

    print("KERNEL_OK")
</pallas_src>

<mosaic_0001>
module attributes {stable_mosaic.version = 11 : i64} {
  func.func @_gde_gcn_kernel(%arg0: memref<16x128xbf16, #tpu.memory_space<vmem>>, %arg1: memref<16x16xbf16, #tpu.memory_space<vmem>>, %arg2: memref<128x128xbf16, #tpu.memory_space<vmem>>, %arg3: memref<1x128xf32, #tpu.memory_space<vmem>>, %arg4: memref<16x128xf32, #tpu.memory_space<vmem>>) attributes {dimension_semantics = [], scalar_prefetch = 0 : i64, scratch_operands = 0 : i64, tpu.core_type = #tpu.core_type<tc>} {
    %c0 = arith.constant 0 : index
    %c0_0 = arith.constant 0 : index
    %0 = vector.load %arg1[%c0, %c0_0] : memref<16x16xbf16, #tpu.memory_space<vmem>>, vector<16x16xbf16>
    %c0_1 = arith.constant 0 : index
    %c0_2 = arith.constant 0 : index
    %1 = vector.load %arg0[%c0_1, %c0_2] : memref<16x128xbf16, #tpu.memory_space<vmem>>, vector<16x128xbf16>
    %cst = arith.constant dense<0.000000e+00> : vector<16x128xf32>
    %2 = tpu.matmul %0, %1, %cst {dimension_numbers = #tpu.dot_dimension_numbers<[1], [0], [0], [1], [0, 0, 1, 1], [], []>} : vector<16x16xbf16>, vector<16x128xbf16>, vector<16x128xf32> -> vector<16x128xf32>
    %3 = arith.truncf %2 : vector<16x128xf32> to vector<16x128xbf16>
    %c0_3 = arith.constant 0 : index
    %c0_4 = arith.constant 0 : index
    %4 = vector.load %arg2[%c0_3, %c0_4] : memref<128x128xbf16, #tpu.memory_space<vmem>>, vector<128x128xbf16>
    %cst_5 = arith.constant dense<0.000000e+00> : vector<16x128xf32>
    %5 = tpu.matmul %3, %4, %cst_5 {dimension_numbers = #tpu.dot_dimension_numbers<[1], [0], [0], [1], [0, 0, 1, 1], [], []>} : vector<16x128xbf16>, vector<128x128xbf16>, vector<16x128xf32> -> vector<16x128xf32>
    %c0_6 = arith.constant 0 : index
    %c0_7 = arith.constant 0 : index
    %6 = vector.load %arg3[%c0_6, %c0_7] : memref<1x128xf32, #tpu.memory_space<vmem>>, vector<1x128xf32>
    %7 = vector.broadcast %6 : vector<1x128xf32> to vector<16x128xf32>
    %8 = arith.addf %5, %7 : vector<16x128xf32>
    %cst_8 = arith.constant 0.000000e+00 : f32
    %9 = vector.broadcast %cst_8 : f32 to vector<16x128xf32>
    %10 = arith.maximumf %8, %9 : vector<16x128xf32>
    %c0_9 = arith.constant 0 : index
    %c0_10 = arith.constant 0 : index
    %11 = vector.load %arg4[%c0_9, %c0_10] : memref<16x128xf32, #tpu.memory_space<vmem>>, vector<16x128xf32>
    tpu.vector_store %arg4[%c0_9, %c0_10], %10 {strides = array<i32>} : memref<16x128xf32, #tpu.memory_space<vmem>>, vector<16x128xf32>,
    return
  }
}

</mosaic_0001>

<llo_original>
// kernel: _lambda_.1
$region0: #{_lambda_.1}
  #allocation0 [shape = 'u32[]', space=smem, size = 0x4, offset = 0x4, fixed_abs, tag = 'smem constant byte address 0x4 - core index']
  #allocation1 [shape = 'u32[144,128]{1,0:T(1,128)}', space=vmem, size = 0x12000, scoped, tag = 'internal scratch']
  %s0 = inlined_call_operand.vmem [shape: bf16[16,128], index: 0, kind: input, shape index: {}]
  %s1 = inlined_call_operand.vmem [shape: bf16[16,16], index: 1, kind: input, shape index: {}]
  %s2 = inlined_call_operand.vmem [shape: bf16[128,128], index: 2, kind: input, shape index: {}]
  %s3 = inlined_call_operand.vmem [shape: f32[1,128], index: 3, kind: input, shape index: {}]
  %s4 = inlined_call_operand.vmem [shape: f32[16,128], index: 4, kind: output, shape index: {}]
  %s5 = sld [smem:[#allocation0]]
  $region26: #{_lambda_.1} parent=0
    _
  %s7 = ssub.s32 1, %s5
  %s8 = scalar_select 0, %s7, %s5
  // Predicated region
  $region2: #{_lambda_.1} parent=0 // pred_check
    _
  $region3: #{_lambda_.1} parent=0 // pred_check_branch
    %10 = sbr.rel (0) target = $region5
  $region4: #{_lambda_.1} parent=0 // pred_region
    _
  $region5: #{_lambda_.1} parent=0 // pred_fallthru
    _
  // Predicated region
  $region6: #{_lambda_.1} parent=0 // pred_check
    _
  $region7: #{_lambda_.1} parent=0 // pred_check_branch
    %12 = sbr.rel (0) target = $region9
  $region8: #{_lambda_.1} parent=0 // pred_region
    _
  $region9: #{_lambda_.1} parent=0 // pred_fallthru
    _
  // Predicated region
  $region10: #{_lambda_.1} parent=0 // pred_check
    _
  $region11: #{_lambda_.1} parent=0 // pred_check_branch
    %14 = sbr.rel (0) target = $region13
  $region12: #{_lambda_.1} parent=0 // pred_region
    _
  $region13: #{_lambda_.1} parent=0 // pred_fallthru
    _
  // Predicated region
  $region14: #{_lambda_.1} parent=0 // pred_check
    _
  $region15: #{_lambda_.1} parent=0 // pred_check_branch
    %16 = sbr.rel (0) target = $region17
  $region16: #{_lambda_.1} parent=0 // pred_region
    _
  $region17: #{_lambda_.1} parent=0 // pred_fallthru
    _
  %v18 = vld [vmem:[%s1] sm:$0xf]
  %v19 = vld [vmem:[%s1 + $0x4] sm:$0xf]
  %v20 = vld [vmem:[%s0] sm:$0xf]
  %v21 = vld [vmem:[%s0 + $0x4] sm:$0xf]
  %v24 = vunpack.c.l.b16 %v18
  %v25 = vunpack.c.l.b16 %v19
  %v26 = vpack.c.b16 %v25, %v24
  %v29 = vunpack.c.l.b16 %v20
  %v30 = vunpack.c.l.b16 %v21
  %v31 = vpack.c.b16 %v30, %v29
  %vm33 = vcmask 130048
  %v35 = vsel %vm33, %v26, 0
  %37 = vmatprep.subr.bf16.mxu0 0
  %38 = vmatpush1.bf16.msra.mxu0 %v31
  %39 = vmatprep.subr.bf16.mxu0 0
  %40 = vmatpush1.bf16.msra.mxu0 0
  %41 = vmatprep.subr.bf16.mxu0 0
  %42 = vmatpush1.bf16.msra.mxu0 0
  %43 = vmatprep.subr.bf16.mxu0 0
  %44 = vmatpush1.bf16.msra.mxu0 0
  %45 = vmatprep.subr.bf16.mxu0 0
  %46 = vmatpush1.bf16.msra.mxu0 0
  %47 = vmatprep.subr.bf16.mxu0 0
  %48 = vmatpush1.bf16.msra.mxu0 0
  %49 = vmatprep.subr.bf16.mxu0 0
  %50 = vmatpush1.bf16.msra.mxu0 0
  %51 = vmatprep.subr.bf16.mxu0 0
  %52 = vmatpush1.bf16.msra.mxu0 0
  %53 = vmatprep.subr.bf16.mxu0 0
  %54 = vmatpush1.bf16.msra.mxu0 0
  %55 = vmatprep.subr.bf16.mxu0 0
  %56 = vmatpush1.bf16.msra.mxu0 0
  %57 = vmatprep.subr.bf16.mxu0 0
  %58 = vmatpush1.bf16.msra.mxu0 0
  %59 = vmatprep.subr.bf16.mxu0 0
  %60 = vmatpush1.bf16.msra.mxu0 0
  %61 = vmatprep.subr.bf16.mxu0 0
  %62 = vmatpush1.bf16.msra.mxu0 0
  %63 = vmatprep.subr.bf16.mxu0 0
  %64 = vmatpush1.bf16.msra.mxu0 0
  %65 = vmatprep.subr.bf16.mxu0 0
  %66 = vmatpush1.bf16.msra.mxu0 0
  %67 = vmatprep.subr.bf16.mxu0 0
  %68 = vmatpush1.bf16.msra.mxu0 0
  %69 = vmatprep.mubr.bf16.mxu0 0
  %70 = vmatmul.mubr.bf16.gmra.mrb[0].mxu0 %v35
  %v71 = vpop.f32.mrb[0].mxu0
  %v72 = vadd.f32 0.0, %v71
  %v73 = vpop.f32.mrb[0].mxu0
  %v74 = vpop.f32.mrb[0].mxu0
  %v75 = vadd.f32 0.0, %v74
  %v76 = vpop.f32.mrb[0].mxu0
  %77 = vdwg.mxu0
  %v78 = vpack.c.bf16 %v75, %v72
  %v79 = vld [vmem:[%s2] sm:$0xf]
  %v80 = vld [vmem:[%s2 + $0x4] sm:$0xf]
  %v81 = vld [vmem:[%s2 + $0x8] sm:$0xf]
  %v82 = vld [vmem:[%s2 + $0xc] sm:$0xf]
  %v83 = vld [vmem:[%s2 + $0x10] sm:$0xf]
  %v84 = vld [vmem:[%s2 + $0x14] sm:$0xf]
  %v85 = vld [vmem:[%s2 + $0x18] sm:$0xf]
  %v86 = vld [vmem:[%s2 + $0x1c] sm:$0xf]
  %v87 = vld [vmem:[%s2 + $0x20] sm:$0xf]
  %v88 = vld [vmem:[%s2 + $0x24] sm:$0xf]
  %v89 = vld [vmem:[%s2 + $0x28] sm:$0xf]
  %v90 = vld [vmem:[%s2 + $0x2c] sm:$0xf]
  %v91 = vld [vmem:[%s2 + $0x30] sm:$0xf]
  %v92 = vld [vmem:[%s2 + $0x34] sm:$0xf]
  %v93 = vld [vmem:[%s2 + $0x38] sm:$0xf]
  %v94 = vld [vmem:[%s2 + $0x3c] sm:$0xf]
  %v95 = vld [vmem:[%s3] sm:$0x1]
  %v97 = vlaneseq
  %v98 = vshrl.u32 %v97, 7
  %v99 = vsub.s32 0, %v98
  %v100 = vrot.slane %v95, %v99
  %v118 = vunpack.c.l.b16 %v79
  %v119 = vunpack.c.l.b16 %v80
  %v120 = vunpack.c.l.b16 %v81
  %v121 = vunpack.c.l.b16 %v82
  %v122 = vunpack.c.l.b16 %v83
  %v123 = vunpack.c.l.b16 %v84
  %v124 = vunpack.c.l.b16 %v85
  %v125 = vunpack.c.l.b16 %v86
  %v126 = vunpack.c.l.b16 %v87
  %v127 = vunpack.c.l.b16 %v88
  %v128 = vunpack.c.l.b16 %v89
  %v129 = vunpack.c.l.b16 %v90
  %v130 = vunpack.c.l.b16 %v91
  %v131 = vunpack.c.l.b16 %v92
  %v132 = vunpack.c.l.b16 %v93
  %v133 = vunpack.c.l.b16 %v94
  %v134 = vpack.c.b16 %v119, %v118
  %v135 = vpack.c.b16 %v121, %v120
  %v136 = vpack.c.b16 %v123, %v122
  %v137 = vpack.c.b16 %v125, %v124
  %v138 = vpack.c.b16 %v127, %v126
  %v139 = vpack.c.b16 %v129, %v128
  %v140 = vpack.c.b16 %v131, %v130
  %v141 = vpack.c.b16 %v133, %v132
  %150 = vmatprep.subr.bf16.mxu0 0
  %151 = vmatpush1.bf16.msra.mxu0 %v134
  %152 = vmatprep.subr.bf16.mxu0 0
  %153 = vmatpush1.bf16.msra.mxu0 %v135
  %154 = vmatprep.subr.bf16.mxu0 0
  %155 = vmatpush1.bf16.msra.mxu0 %v136
  %156 = vmatprep.subr.bf16.mxu0 0
  %157 = vmatpush1.bf16.msra.mxu0 %v137
  %158 = vmatprep.subr.bf16.mxu0 0
  %159 = vmatpush1.bf16.msra.mxu0 %v138
  %160 = vmatprep.subr.bf16.mxu0 0
  %161 = vmatpush1.bf16.msra.mxu0 %v139
  %162 = vmatprep.subr.bf16.mxu0 0
  %163 = vmatpush1.bf16.msra.mxu0 %v140
  %164 = vmatprep.subr.bf16.mxu0 0
  %165 = vmatpush1.bf16.msra.mxu0 %v141
  %166 = vmatprep.subr.bf16.mxu0 0
  %167 = vmatpush1.bf16.msra.mxu0 0
  %168 = vmatprep.subr.bf16.mxu0 0
  %169 = vmatpush1.bf16.msra.mxu0 0
  %170 = vmatprep.subr.bf16.mxu0 0
  %171 = vmatpush1.bf16.msra.mxu0 0
  %172 = vmatprep.subr.bf16.mxu0 0
  %173 = vmatpush1.bf16.msra.mxu0 0
  %174 = vmatprep.subr.bf16.mxu0 0
  %175 = vmatpush1.bf16.msra.mxu0 0
  %176 = vmatprep.subr.bf16.mxu0 0
  %177 = vmatpush1.bf16.msra.mxu0 0
  %178 = vmatprep.subr.bf16.mxu0 0
  %179 = vmatpush1.bf16.msra.mxu0 0
  %180 = vmatprep.subr.bf16.mxu0 0
  %181 = vmatpush1.bf16.msra.mxu0 0
  %182 = vmatprep.mubr.bf16.mxu0 0
  %183 = vmatmul.mubr.bf16.gmra.mrb[0].mxu0 %v78
  %v184 = vpop.f32.mrb[0].mxu0
  %v185 = vadd.f32 %v100, %v184
  %v186 = vpop.f32.mrb[0].mxu0
  %v187 = vpop.f32.mrb[0].mxu0
  %v188 = vadd.f32 %v100, %v187
  %v189 = vpop.f32.mrb[0].mxu0
  %190 = vdwg.mxu0
  %v191 = vmax.f32 %v185, 0.0
  %v192 = vmax.f32 %v188, 0.0
  %193 = vst [vmem:[%s4] sm:$0xff] %v191
  %194 = vst [vmem:[%s4 + $0x8] sm:$0xff] %v192
  // Predicated region
  $region18: #{_lambda_.1} parent=0 // pred_check
    _
  $region19: #{_lambda_.1} parent=0 // pred_check_branch
    %196 = sbr.rel (0) target = $region21
  $region20: #{_lambda_.1} parent=0 // pred_region
    _
  $region21: #{_lambda_.1} parent=0 // pred_fallthru
    _
  // Predicated region
  $region22: #{_lambda_.1} parent=0 // pred_check
    _
  $region23: #{_lambda_.1} parent=0 // pred_check_branch
    %198 = sbr.rel (0) target = $region25
  $region24: #{_lambda_.1} parent=0 // pred_region
    _
  $region25: #{_lambda_.1} parent=0 // pred_fallthru
    _

</llo_original>
